<compile_context>
chip_gen: v7x
topology: tpu7x:2x2x1
jax: 0.10.0
libtpu: 0.0.40
codegen_flags: <defaults>
</compile_context>

<pallas_src>
import jax
import jax.numpy as jnp
from jax.experimental import pallas as pl
from jax.experimental.pallas import tpu as pltpu

D_IN = 10
D_H = 128
D_OUT = 4
D_OUT_PAD = 8  # narrow, contiguous output slab; real logits live in columns [0, 4)


def _round_up(n, m):
    return ((n + m - 1) // m) * m


def snake_mlp_kernel(x_ref, w1_ref, b1_ref, w2_ref, b2_ref, w3_ref, b3_ref, o_ref):
    # fc1 -> relu -> fc2 -> relu -> fc3, fully fused on one batch tile.
    # bf16 MXU operands, f32 accumulation; bias/ReLU on the f32 accumulator (VPU).
    x = x_ref[...].astype(jnp.bfloat16)
    h1 = jnp.dot(x, w1_ref[...], preferred_element_type=jnp.float32) + b1_ref[...]
    h1 = jnp.maximum(h1, 0.0).astype(jnp.bfloat16)
    h2 = jnp.dot(h1, w2_ref[...], preferred_element_type=jnp.float32) + b2_ref[...]
    h2 = jnp.maximum(h2, 0.0).astype(jnp.bfloat16)
    o_ref[...] = jnp.dot(h2, w3_ref[...], preferred_element_type=jnp.float32) + b3_ref[...]


def snake_ai_forward(x, params, *, tile_b=4096):
    """x: (B, 10) f32. params: prepared (bf16 weights, f32 biases, fc3 padded to 8 cols)."""
    w1, b1, w2, b2, w3p, b3p = params
    B = x.shape[0]

    # Pad batch only to a multiple of 8 sublanes; the grid uses a ragged last block
    # (pl.cdiv) so we never add a full extra tile of work for a few trailing rows.
    B_pad = _round_up(max(B, 1), 8)
    if B_pad != B:
        x = jnp.pad(x, ((0, B_pad - B), (0, 0)))

    tb = _round_up(min(tile_b, B_pad), 8)
    grid = pl.cdiv(B_pad, tb)

    const = lambda i: (0, 0)  # same block every tile -> weights stay VMEM-resident
    out = pl.pallas_call(
        snake_mlp_kernel,
        out_shape=jax.ShapeDtypeStruct((B_pad, D_OUT_PAD), jnp.float32),
        grid=(grid,),
        in_specs=[
            pl.BlockSpec((tb, D_IN), lambda i: (i, 0)),   # x tile streams per grid step
            pl.BlockSpec((D_IN, D_H), const),             # w1 (bf16)
            pl.BlockSpec((1, D_H), const),                # b1 (f32)
            pl.BlockSpec((D_H, D_H), const),              # w2 (bf16)
            pl.BlockSpec((1, D_H), const),                # b2 (f32)
            pl.BlockSpec((D_H, D_OUT_PAD), const),        # w3 padded to 8 cols (bf16)
            pl.BlockSpec((1, D_OUT_PAD), const),          # b3 padded to 8 cols (f32)
        ],
        out_specs=pl.BlockSpec((tb, D_OUT_PAD), lambda i: (i, 0)),
        compiler_params=pltpu.CompilerParams(
            dimension_semantics=("parallel",),  # shard batch tiles across TCs where possible
        ),
    )(x, w1, b1, w2, b2, w3p, b3p)
    # Tiny slice pass now: only B*32 B read per call (was B_pad*512 B).
    return out[:B, :D_OUT]


def init_params(key):
    """Deterministic init matching PyTorch nn.Linear shapes/distribution
    (U(-1/sqrt(fan_in), 1/sqrt(fan_in))); stored as (fan_in, fan_out)."""
    ks = jax.random.split(key, 6)

    def linear(kw, kb, fan_in, fan_out):
        bound = 1.0 / jnp.sqrt(jnp.float32(fan_in))
        w = jax.random.uniform(kw, (fan_in, fan_out), jnp.float32, -bound, bound)
        b = jax.random.uniform(kb, (1, fan_out), jnp.float32, -bound, bound)
        return w, b

    w1, b1 = linear(ks[0], ks[1], D_IN, D_H)
    w2, b2 = linear(ks[2], ks[3], D_H, D_H)
    w3, b3 = linear(ks[4], ks[5], D_H, D_OUT)
    return w1, b1, w2, b2, w3, b3


def prepare_params(w1, b1, w2, b2, w3, b3):
    """Cast weights to bf16 (native MXU path) and zero-pad fc3 to an 8-wide output slab.
    Biases stay f32 (VPU work stays f32, incl. on v5e)."""
    w3p = jnp.zeros((D_H, D_OUT_PAD), jnp.float32).at[:, :D_OUT].set(w3)
    b3p = jnp.zeros((1, D_OUT_PAD), jnp.float32).at[:, :D_OUT].set(b3)
    return (
        w1.astype(jnp.bfloat16), b1,
        w2.astype(jnp.bfloat16), b2,
        w3p.astype(jnp.bfloat16), b3p,
    )


def reference_forward(x, w1, b1, w2, b2, w3, b3):
    """Pure-JAX reference mirroring the kernel's precision policy
    (bf16 operands, f32 accumulation) for a tight numerical comparison."""
    w1b, w2b, w3b = (w1.astype(jnp.bfloat16), w2.astype(jnp.bfloat16), w3.astype(jnp.bfloat16))
    h1 = jnp.maximum(
        jnp.dot(x.astype(jnp.bfloat16), w1b, preferred_element_type=jnp.float32) + b1, 0.0)
    h2 = jnp.maximum(
        jnp.dot(h1.astype(jnp.bfloat16), w2b, preferred_element_type=jnp.float32) + b2, 0.0)
    return jnp.dot(h2.astype(jnp.bfloat16), w3b, preferred_element_type=jnp.float32) + b3


if __name__ == "__main__":
    key = jax.random.PRNGKey(0)
    k_x, k_p = jax.random.split(key)

    # Small shape consistent with the module: a batch of 10-dim state vectors.
    batch = 8
    x = jax.random.normal(k_x, (batch, D_IN), jnp.float32)
    raw_params = init_params(k_p)
    params = prepare_params(*raw_params)

    out = jax.block_until_ready(snake_ai_forward(x, params))
    ref = reference_forward(x, *raw_params)
    assert out.shape == (batch, D_OUT), out.shape
    assert jnp.allclose(out, ref, atol=2e-3, rtol=2e-3), "mismatch vs reference"

    # Exercise the tiled/pipelined path: multiple grid steps, ragged last block
    # (1003 rows -> padded to 1008; cdiv(1008, 256) = 4 tiles, last one partial).
    big_b = 1003
    xb = jax.random.normal(jax.random.PRNGKey(1), (big_b, D_IN), jnp.float32)
    out_b = jax.block_until_ready(snake_ai_forward(xb, params, tile_b=256))
    ref_b = reference_forward(xb, *raw_params)
    assert out_b.shape == (big_b, D_OUT), out_b.shape
    assert jnp.allclose(out_b, ref_b, atol=2e-3, rtol=2e-3), "mismatch vs reference (tiled)"

    print("KERNEL_OK")
</pallas_src>

<mosaic_0001>
module attributes {stable_mosaic.version = 11 : i64} {
  func.func @snake_mlp_kernel(%arg0: i32, %arg1: memref<8x10xf32, #tpu.memory_space<vmem>>, %arg2: memref<10x128xbf16, #tpu.memory_space<vmem>>, %arg3: memref<1x128xf32, #tpu.memory_space<vmem>>, %arg4: memref<128x128xbf16, #tpu.memory_space<vmem>>, %arg5: memref<1x128xf32, #tpu.memory_space<vmem>>, %arg6: memref<128x8xbf16, #tpu.memory_space<vmem>>, %arg7: memref<1x8xf32, #tpu.memory_space<vmem>>, %arg8: memref<8x8xf32, #tpu.memory_space<vmem>>) attributes {dimension_semantics = [#tpu.dimension_semantics<parallel>], iteration_bounds = array<i64: 1>, scalar_prefetch = 0 : i64, scratch_operands = 0 : i64, tpu.core_type = #tpu.core_type<tc>, window_params = [{transform_indices = @transform_0, window_bounds = array<i64: 8, 10>}, {pipeline_mode = #tpu.pipeline_mode<synchronous>, transform_indices = @transform_1, window_bounds = array<i64: 10, 128>}, {pipeline_mode = #tpu.pipeline_mode<synchronous>, transform_indices = @transform_2, window_bounds = array<i64: 1, 128>}, {pipeline_mode = #tpu.pipeline_mode<synchronous>, transform_indices = @transform_3, window_bounds = array<i64: 128, 128>}, {pipeline_mode = #tpu.pipeline_mode<synchronous>, transform_indices = @transform_4, window_bounds = array<i64: 1, 128>}, {pipeline_mode = #tpu.pipeline_mode<synchronous>, transform_indices = @transform_5, window_bounds = array<i64: 128, 8>}, {pipeline_mode = #tpu.pipeline_mode<synchronous>, transform_indices = @transform_6, window_bounds = array<i64: 1, 8>}, {transform_indices = @transform_7, window_bounds = array<i64: 8, 8>}]} {
    %c0 = arith.constant 0 : index
    %c0_0 = arith.constant 0 : index
    %0 = vector.load %arg1[%c0, %c0_0] : memref<8x10xf32, #tpu.memory_space<vmem>>, vector<8x10xf32>
    %1 = arith.truncf %0 : vector<8x10xf32> to vector<8x10xbf16>
    %c0_1 = arith.constant 0 : index
    %c0_2 = arith.constant 0 : index
    %2 = vector.load %arg2[%c0_1, %c0_2] : memref<10x128xbf16, #tpu.memory_space<vmem>>, vector<10x128xbf16>
    %cst = arith.constant dense<0.000000e+00> : vector<8x128xf32>
    %3 = tpu.matmul %1, %2, %cst {dimension_numbers = #tpu.dot_dimension_numbers<[1], [0], [0], [1], [0, 0, 1, 1], [], []>} : vector<8x10xbf16>, vector<10x128xbf16>, vector<8x128xf32> -> vector<8x128xf32>
    %c0_3 = arith.constant 0 : index
    %c0_4 = arith.constant 0 : index
    %4 = vector.load %arg3[%c0_3, %c0_4] : memref<1x128xf32, #tpu.memory_space<vmem>>, vector<1x128xf32>
    %5 = vector.broadcast %4 : vector<1x128xf32> to vector<8x128xf32>
    %6 = arith.addf %3, %5 : vector<8x128xf32>
    %cst_5 = arith.constant 0.000000e+00 : f32
    %7 = vector.broadcast %cst_5 : f32 to vector<8x128xf32>
    %8 = arith.maximumf %6, %7 : vector<8x128xf32>
    %9 = arith.truncf %8 : vector<8x128xf32> to vector<8x128xbf16>
    %c0_6 = arith.constant 0 : index
    %c0_7 = arith.constant 0 : index
    %10 = vector.load %arg4[%c0_6, %c0_7] : memref<128x128xbf16, #tpu.memory_space<vmem>>, vector<128x128xbf16>
    %cst_8 = arith.constant dense<0.000000e+00> : vector<8x128xf32>
    %11 = tpu.matmul %9, %10, %cst_8 {dimension_numbers = #tpu.dot_dimension_numbers<[1], [0], [0], [1], [0, 0, 1, 1], [], []>} : vector<8x128xbf16>, vector<128x128xbf16>, vector<8x128xf32> -> vector<8x128xf32>
    %c0_9 = arith.constant 0 : index
    %c0_10 = arith.constant 0 : index
    %12 = vector.load %arg5[%c0_9, %c0_10] : memref<1x128xf32, #tpu.memory_space<vmem>>, vector<1x128xf32>
    %13 = vector.broadcast %12 : vector<1x128xf32> to vector<8x128xf32>
    %14 = arith.addf %11, %13 : vector<8x128xf32>
    %cst_11 = arith.constant 0.000000e+00 : f32
    %15 = vector.broadcast %cst_11 : f32 to vector<8x128xf32>
    %16 = arith.maximumf %14, %15 : vector<8x128xf32>
    %17 = arith.truncf %16 : vector<8x128xf32> to vector<8x128xbf16>
    %c0_12 = arith.constant 0 : index
    %c0_13 = arith.constant 0 : index
    %18 = vector.load %arg6[%c0_12, %c0_13] : memref<128x8xbf16, #tpu.memory_space<vmem>>, vector<128x8xbf16>
    %cst_14 = arith.constant dense<0.000000e+00> : vector<8x8xf32>
    %19 = tpu.matmul %17, %18, %cst_14 {dimension_numbers = #tpu.dot_dimension_numbers<[1], [0], [0], [1], [0, 0, 1, 1], [], []>} : vector<8x128xbf16>, vector<128x8xbf16>, vector<8x8xf32> -> vector<8x8xf32>
    %c0_15 = arith.constant 0 : index
    %c0_16 = arith.constant 0 : index
    %20 = vector.load %arg7[%c0_15, %c0_16] : memref<1x8xf32, #tpu.memory_space<vmem>>, vector<1x8xf32>
    %21 = vector.broadcast %20 : vector<1x8xf32> to vector<8x8xf32>
    %22 = arith.addf %19, %21 : vector<8x8xf32>
    %c0_17 = arith.constant 0 : index
    %c0_18 = arith.constant 0 : index
    %23 = vector.load %arg8[%c0_17, %c0_18] : memref<8x8xf32, #tpu.memory_space<vmem>>, vector<8x8xf32>
    tpu.vector_store %arg8[%c0_17, %c0_18], %22 {strides = array<i32>} : memref<8x8xf32, #tpu.memory_space<vmem>>, vector<8x8xf32>,
    return
  }
  func.func @transform_0(%arg0: i32) -> (i32, i32) {
    %c0_i32 = arith.constant 0 : i32
    %c0_i32_0 = arith.constant 0 : i32
    return %arg0, %c0_i32 : i32, i32
  }
  func.func @transform_1(%arg0: i32) -> (i32, i32) {
    %c0_i32 = arith.constant 0 : i32
    %c0_i32_0 = arith.constant 0 : i32
    %c0_i32_1 = arith.constant 0 : i32
    return %c0_i32, %c0_i32_0 : i32, i32
  }
  func.func @transform_2(%arg0: i32) -> (i32, i32) {
    %c0_i32 = arith.constant 0 : i32
    %c0_i32_0 = arith.constant 0 : i32
    %c0_i32_1 = arith.constant 0 : i32
    return %c0_i32, %c0_i32_0 : i32, i32
  }
  func.func @transform_3(%arg0: i32) -> (i32, i32) {
    %c0_i32 = arith.constant 0 : i32
    %c0_i32_0 = arith.constant 0 : i32
    %c0_i32_1 = arith.constant 0 : i32
    return %c0_i32, %c0_i32_0 : i32, i32
  }
  func.func @transform_4(%arg0: i32) -> (i32, i32) {
    %c0_i32 = arith.constant 0 : i32
    %c0_i32_0 = arith.constant 0 : i32
    %c0_i32_1 = arith.constant 0 : i32
    return %c0_i32, %c0_i32_0 : i32, i32
  }
  func.func @transform_5(%arg0: i32) -> (i32, i32) {
    %c0_i32 = arith.constant 0 : i32
    %c0_i32_0 = arith.constant 0 : i32
    %c0_i32_1 = arith.constant 0 : i32
    return %c0_i32, %c0_i32_0 : i32, i32
  }
  func.func @transform_6(%arg0: i32) -> (i32, i32) {
    %c0_i32 = arith.constant 0 : i32
    %c0_i32_0 = arith.constant 0 : i32
    %c0_i32_1 = arith.constant 0 : i32
    return %c0_i32, %c0_i32_0 : i32, i32
  }
  func.func @transform_7(%arg0: i32) -> (i32, i32) {
    %c0_i32 = arith.constant 0 : i32
    %c0_i32_0 = arith.constant 0 : i32
    return %arg0, %c0_i32 : i32, i32
  }
}

</mosaic_0001>

<llo_original>
// kernel: tpu_custom_call.1
$region0: #{tpu_custom_call.1}
  #allocation0 [shape = 'u32[]', space=smem, size = 0x4, offset = 0x4, fixed_abs, tag = 'smem constant byte address 0x4 - core index']
  #allocation1 [shape = 'u32[144,128]{1,0:T(1,128)}', space=vmem, size = 0x12000, scoped, tag = 'internal scratch']
  %s0 = inlined_call_operand.vmem [shape: f32[8,10], index: 0, kind: input, shape index: {}]
  %s1 = inlined_call_operand.hbm [shape: bf16[10,128], index: 1, kind: input, shape index: {}]
  %s2 = inlined_call_operand.vmem [shape: f32[1,128], index: 2, kind: input, shape index: {}]
  %s3 = inlined_call_operand.vmem [shape: bf16[128,128], index: 3, kind: input, shape index: {}]
  %s4 = inlined_call_operand.vmem [shape: f32[1,128], index: 4, kind: input, shape index: {}]
  %s5 = inlined_call_operand.vmem [shape: bf16[128,8], index: 5, kind: input, shape index: {}]
  %s6 = inlined_call_operand.vmem [shape: f32[1,8], index: 6, kind: input, shape index: {}]
  %s7 = inlined_call_operand.hbm [shape: f32[8,8], index: 7, kind: output, shape index: {}]
  %s8 = sld [smem:[#allocation0]]
  $region42: #{tpu_custom_call.1} parent=0
    _
  %s10 = ssub.s32 1, %s8
  %s11 = scalar_select 0, %s10, %s8
  $region1: #{tpu_custom_call.1} parent=0
    #allocation2 [shape = 'u8[4096]{0}', space=vmem, size = 0x1000, scoped, tag = 'input window, operand 1, single buffered']
    #allocation3 [shape = 's32[1]{0}', space=sflag, size = 0x4, scoped, tag = 'scoped memory for tpu_custom_call.1']
    #allocation4 [shape = 's32[1]{0}', space=sflag, size = 0x4, scoped, tag = 'scoped memory for tpu_custom_call.1']
    #allocation5 [shape = 'u8[4096]{0}', space=vmem, size = 0x1000, scoped, tag = 'output window, operand 0, single buffered']
    %12 = vsyncpa [#allocation3], 0
    %13 = vsyncpa [#allocation4], 0
    // Predicated region
    $region2: #{tpu_custom_call.1} parent=1 // pred_check
      _
    $region3: #{tpu_custom_call.1} parent=1 // pred_check_branch
      %15 = sbr.rel (0) target = $region5
    $region4: #{tpu_custom_call.1} parent=1 // pred_region
      _
    $region5: #{tpu_custom_call.1} parent=1 // pred_fallthru
      _
    // Predicated region
    $region6: #{tpu_custom_call.1} parent=1 // pred_check
      _
    $region7: #{tpu_custom_call.1} parent=1 // pred_check_branch
      %17 = sbr.rel (0) target = $region9
    $region8: #{tpu_custom_call.1} parent=1 // pred_region
      %s19 = ssub.s32 128, 128
      %20 = vsyncadd [#allocation3], %s19
      %s21 = sshll.u32 [#allocation2], 4
      %s22 = int_to_ptr.vmem [resolvable:$true] %s21
      %27 = dma.hbm_to_vmem [thread:$0]  %s1, 128, %s22, [#allocation3], 64, 64, 4
    $region9: #{tpu_custom_call.1} parent=1 // pred_fallthru
      _
    // Predicated region
    $region10: #{tpu_custom_call.1} parent=1 // pred_check
      _
    $region11: #{tpu_custom_call.1} parent=1 // pred_check_branch
      %29 = sbr.rel (0) target = $region13
    $region12: #{tpu_custom_call.1} parent=1 // pred_region
      _
    $region13: #{tpu_custom_call.1} parent=1 // pred_fallthru
      _
    // Predicated region
    $region14: #{tpu_custom_call.1} parent=1 // pred_check
      _
    $region15: #{tpu_custom_call.1} parent=1 // pred_check_branch
      %31 = sbr.rel (0) target = $region17
    $region16: #{tpu_custom_call.1} parent=1 // pred_region
      _
    $region17: #{tpu_custom_call.1} parent=1 // pred_fallthru
      _
    // Predicated region
    $region18: #{tpu_custom_call.1} parent=1 // pred_check
      _
    $region19: #{tpu_custom_call.1} parent=1 // pred_check_branch
      %33 = sbr.rel (0) target = $region21
    $region20: #{tpu_custom_call.1} parent=1 // pred_region
      _
    $region21: #{tpu_custom_call.1} parent=1 // pred_fallthru
      _
    // Predicated region
    $region22: #{tpu_custom_call.1} parent=1 // pred_check
      _
    $region23: #{tpu_custom_call.1} parent=1 // pred_check_branch
      %35 = sbr.rel (0) target = $region25
    $region24: #{tpu_custom_call.1} parent=1 // pred_region
      _
    $region25: #{tpu_custom_call.1} parent=1 // pred_fallthru
      _
    // Predicated region
    $region26: #{tpu_custom_call.1} parent=1 // pred_check
      _
    $region27: #{tpu_custom_call.1} parent=1 // pred_check_branch
      %37 = sbr.rel (0) target = $region29
    $region28: #{tpu_custom_call.1} parent=1 // pred_region
      _
    $region29: #{tpu_custom_call.1} parent=1 // pred_fallthru
      _
    // Predicated region
    $region30: #{tpu_custom_call.1} parent=1 // pred_check
      _
    $region31: #{tpu_custom_call.1} parent=1 // pred_check_branch
      %39 = sbr.rel (0) target = $region33
    $region32: #{tpu_custom_call.1} parent=1 // pred_region
      %40 = dma.done [#allocation3], 128
    $region33: #{tpu_custom_call.1} parent=1 // pred_fallthru
      _
    %v42 = vld [vmem:[%s0] sm:$0xff]
    %v43 = vpack.c.bf16 %v42, %v42
    %v44 = vld [vmem:[#allocation2] sm:$0xf]
    %v45 = vld [vmem:[#allocation2 + $0x4] sm:$0x1]
    %v46 = vld [vmem:[%s2] sm:$0x1]
    %v48 = vlaneseq
    %v49 = vshrl.u32 %v48, 7
    %v50 = vsub.s32 0, %v49
    %v51 = vrot.slane %v46, %v50
    %v55 = vunpack.c.l.b16 %v44
    %v56 = vunpack.c.l.b16 %v45
    %v57 = vpack.c.b16 %v56, %v55
    %vm58 = vcmask 80896
    %v60 = vsel %vm58, %v43, 0
    %vm62 = vcmask 1044480
    %v64 = vsel %vm62, %v57, 0
    %66 = vmatprep.subr.bf16.mxu0 0
    %67 = vmatpush1.bf16.msra.mxu0 %v64
    %68 = vmatprep.subr.bf16.mxu0 0
    %69 = vmatpush1.bf16.msra.mxu0 0
    %70 = vmatprep.subr.bf16.mxu0 0
    %71 = vmatpush1.bf16.msra.mxu0 0
    %72 = vmatprep.subr.bf16.mxu0 0
    %73 = vmatpush1.bf16.msra.mxu0 0
    %74 = vmatprep.subr.bf16.mxu0 0
    %75 = vmatpush1.bf16.msra.mxu0 0
    %76 = vmatprep.subr.bf16.mxu0 0
    %77 = vmatpush1.bf16.msra.mxu0 0
    %78 = vmatprep.subr.bf16.mxu0 0
    %79 = vmatpush1.bf16.msra.mxu0 0
    %80 = vmatprep.subr.bf16.mxu0 0
    %81 = vmatpush1.bf16.msra.mxu0 0
    %82 = vmatprep.subr.bf16.mxu0 0
    %83 = vmatpush1.bf16.msra.mxu0 0
    %84 = vmatprep.subr.bf16.mxu0 0
    %85 = vmatpush1.bf16.msra.mxu0 0
    %86 = vmatprep.subr.bf16.mxu0 0
    %87 = vmatpush1.bf16.msra.mxu0 0
    %88 = vmatprep.subr.bf16.mxu0 0
    %89 = vmatpush1.bf16.msra.mxu0 0
    %90 = vmatprep.subr.bf16.mxu0 0
    %91 = vmatpush1.bf16.msra.mxu0 0
    %92 = vmatprep.subr.bf16.mxu0 0
    %93 = vmatpush1.bf16.msra.mxu0 0
    %94 = vmatprep.subr.bf16.mxu0 0
    %95 = vmatpush1.bf16.msra.mxu0 0
    %96 = vmatprep.subr.bf16.mxu0 0
    %97 = vmatpush1.bf16.msra.mxu0 0
    %98 = vmatprep.mubr.bf16.mxu0 0
    %99 = vmatmul.mubr.bf16.gmra.mrb[0].mxu0 %v60
    %v100 = vpop.f32.mrb[0].mxu0
    %v101 = vadd.f32 %v51, %v100
    %v102 = vpop.f32.mrb[0].mxu0
    %v103 = vpop.f32.mrb[0].mxu0
    %v104 = vpop.f32.mrb[0].mxu0
    %105 = vdwg.mxu0
    %v106 = vmax.f32 %v101, 0.0
    %v107 = vpack.c.bf16 %v106, %v106
    %v108 = vld [vmem:[%s3] sm:$0xf]
    %v109 = vld [vmem:[%s3 + $0x4] sm:$0xf]
    %v110 = vld [vmem:[%s3 + $0x8] sm:$0xf]
    %v111 = vld [vmem:[%s3 + $0xc] sm:$0xf]
    %v112 = vld [vmem:[%s3 + $0x10] sm:$0xf]
    %v113 = vld [vmem:[%s3 + $0x14] sm:$0xf]
    %v114 = vld [vmem:[%s3 + $0x18] sm:$0xf]
    %v115 = vld [vmem:[%s3 + $0x1c] sm:$0xf]
    %v116 = vld [vmem:[%s3 + $0x20] sm:$0xf]
    %v117 = vld [vmem:[%s3 + $0x24] sm:$0xf]
    %v118 = vld [vmem:[%s3 + $0x28] sm:$0xf]
    %v119 = vld [vmem:[%s3 + $0x2c] sm:$0xf]
    %v120 = vld [vmem:[%s3 + $0x30] sm:$0xf]
    %v121 = vld [vmem:[%s3 + $0x34] sm:$0xf]
    %v122 = vld [vmem:[%s3 + $0x38] sm:$0xf]
    %v123 = vld [vmem:[%s3 + $0x3c] sm:$0xf]
    %v124 = vld [vmem:[%s4] sm:$0x1]
    %v126 = vlaneseq
    %v127 = vshrl.u32 %v126, 7
    %v128 = vsub.s32 0, %v127
    %v129 = vrot.slane %v124, %v128
    %v147 = vunpack.c.l.b16 %v108
    %v148 = vunpack.c.l.b16 %v109
    %v149 = vunpack.c.l.b16 %v110
    %v150 = vunpack.c.l.b16 %v111
    %v151 = vunpack.c.l.b16 %v112
    %v152 = vunpack.c.l.b16 %v113
    %v153 = vunpack.c.l.b16 %v114
    %v154 = vunpack.c.l.b16 %v115
    %v155 = vunpack.c.l.b16 %v116
    %v156 = vunpack.c.l.b16 %v117
    %v157 = vunpack.c.l.b16 %v118
    %v158 = vunpack.c.l.b16 %v119
    %v159 = vunpack.c.l.b16 %v120
    %v160 = vunpack.c.l.b16 %v121
    %v161 = vunpack.c.l.b16 %v122
    %v162 = vunpack.c.l.b16 %v123
    %v163 = vpack.c.b16 %v148, %v147
    %v164 = vpack.c.b16 %v150, %v149
    %v165 = vpack.c.b16 %v152, %v151
    %v166 = vpack.c.b16 %v154, %v153
    %v167 = vpack.c.b16 %v156, %v155
    %v168 = vpack.c.b16 %v158, %v157
    %v169 = vpack.c.b16 %v160, %v159
    %v170 = vpack.c.b16 %v162, %v161
    %179 = vmatprep.subr.bf16.mxu0 0
    %180 = vmatpush1.bf16.msra.mxu0 %v163
    %181 = vmatprep.subr.bf16.mxu0 0
    %182 = vmatpush1.bf16.msra.mxu0 %v164
    %183 = vmatprep.subr.bf16.mxu0 0
    %184 = vmatpush1.bf16.msra.mxu0 %v165
    %185 = vmatprep.subr.bf16.mxu0 0
    %186 = vmatpush1.bf16.msra.mxu0 %v166
    %187 = vmatprep.subr.bf16.mxu0 0
    %188 = vmatpush1.bf16.msra.mxu0 %v167
    %189 = vmatprep.subr.bf16.mxu0 0
    %190 = vmatpush1.bf16.msra.mxu0 %v168
    %191 = vmatprep.subr.bf16.mxu0 0
    %192 = vmatpush1.bf16.msra.mxu0 %v169
    %193 = vmatprep.subr.bf16.mxu0 0
    %194 = vmatpush1.bf16.msra.mxu0 %v170
    %195 = vmatprep.subr.bf16.mxu0 0
    %196 = vmatpush1.bf16.msra.mxu0 0
    %197 = vmatprep.subr.bf16.mxu0 0
    %198 = vmatpush1.bf16.msra.mxu0 0
    %199 = vmatprep.subr.bf16.mxu0 0
    %200 = vmatpush1.bf16.msra.mxu0 0
    %201 = vmatprep.subr.bf16.mxu0 0
    %202 = vmatpush1.bf16.msra.mxu0 0
    %203 = vmatprep.subr.bf16.mxu0 0
    %204 = vmatpush1.bf16.msra.mxu0 0
    %205 = vmatprep.subr.bf16.mxu0 0
    %206 = vmatpush1.bf16.msra.mxu0 0
    %207 = vmatprep.subr.bf16.mxu0 0
    %208 = vmatpush1.bf16.msra.mxu0 0
    %209 = vmatprep.subr.bf16.mxu0 0
    %210 = vmatpush1.bf16.msra.mxu0 0
    %211 = vmatprep.mubr.bf16.mxu0 0
    %212 = vmatmul.mubr.bf16.gmra.mrb[0].mxu0 %v107
    %v213 = vpop.f32.mrb[0].mxu0
    %v214 = vadd.f32 %v129, %v213
    %v215 = vpop.f32.mrb[0].mxu0
    %v216 = vpop.f32.mrb[0].mxu0
    %v217 = vpop.f32.mrb[0].mxu0
    %218 = vdwg.mxu0
    %v219 = vmax.f32 %v214, 0.0
    %v220 = vpack.c.bf16 %v219, %v219
    %v221 = vld [vmem:[%s5] sm:$0xf]
    %v222 = vld [vmem:[%s5 + $0x4] sm:$0xf]
    %v223 = vld [vmem:[%s5 + $0x8] sm:$0xf]
    %v224 = vld [vmem:[%s5 + $0xc] sm:$0xf]
    %v225 = vld [vmem:[%s5 + $0x10] sm:$0xf]
    %v226 = vld [vmem:[%s5 + $0x14] sm:$0xf]
    %v227 = vld [vmem:[%s5 + $0x18] sm:$0xf]
    %v228 = vld [vmem:[%s5 + $0x1c] sm:$0xf]
    %v229 = vld [vmem:[%s5 + $0x20] sm:$0xf]
    %v230 = vld [vmem:[%s5 + $0x24] sm:$0xf]
    %v231 = vld [vmem:[%s5 + $0x28] sm:$0xf]
    %v232 = vld [vmem:[%s5 + $0x2c] sm:$0xf]
    %v233 = vld [vmem:[%s5 + $0x30] sm:$0xf]
    %v234 = vld [vmem:[%s5 + $0x34] sm:$0xf]
    %v235 = vld [vmem:[%s5 + $0x38] sm:$0xf]
    %v236 = vld [vmem:[%s5 + $0x3c] sm:$0xf]
    %v237 = vld [vmem:[%s6] sm:$0x1]
    %v239 = vlaneseq
    %v240 = vshrl.u32 %v239, 7
    %v241 = vsub.s32 0, %v240
    %v242 = vrot.slane %v237, %v241
    %v260 = vunpack.c.l.b16 %v221
    %v261 = vunpack.c.l.b16 %v222
    %v262 = vunpack.c.l.b16 %v223
    %v263 = vunpack.c.l.b16 %v224
    %v264 = vunpack.c.l.b16 %v225
    %v265 = vunpack.c.l.b16 %v226
    %v266 = vunpack.c.l.b16 %v227
    %v267 = vunpack.c.l.b16 %v228
    %v268 = vunpack.c.l.b16 %v229
    %v269 = vunpack.c.l.b16 %v230
    %v270 = vunpack.c.l.b16 %v231
    %v271 = vunpack.c.l.b16 %v232
    %v272 = vunpack.c.l.b16 %v233
    %v273 = vunpack.c.l.b16 %v234
    %v274 = vunpack.c.l.b16 %v235
    %v275 = vunpack.c.l.b16 %v236
    %v276 = vpack.c.b16 %v261, %v260
    %v277 = vpack.c.b16 %v263, %v262
    %v278 = vpack.c.b16 %v265, %v264
    %v279 = vpack.c.b16 %v267, %v266
    %v280 = vpack.c.b16 %v269, %v268
    %v281 = vpack.c.b16 %v271, %v270
    %v282 = vpack.c.b16 %v273, %v272
    %v283 = vpack.c.b16 %v275, %v274
    %292 = vmatprep.subr.bf16.mxu0 0
    %293 = vmatpush1.bf16.msra.mxu0 %v276
    %294 = vmatprep.subr.bf16.mxu0 0
    %295 = vmatpush1.bf16.msra.mxu0 %v277
    %296 = vmatprep.subr.bf16.mxu0 0
    %297 = vmatpush1.bf16.msra.mxu0 %v278
    %298 = vmatprep.subr.bf16.mxu0 0
    %299 = vmatpush1.bf16.msra.mxu0 %v279
    %300 = vmatprep.subr.bf16.mxu0 0
    %301 = vmatpush1.bf16.msra.mxu0 %v280
    %302 = vmatprep.subr.bf16.mxu0 0
    %303 = vmatpush1.bf16.msra.mxu0 %v281
    %304 = vmatprep.subr.bf16.mxu0 0
    %305 = vmatpush1.bf16.msra.mxu0 %v282
    %306 = vmatprep.subr.bf16.mxu0 0
    %307 = vmatpush1.bf16.msra.mxu0 %v283
    %308 = vmatprep.subr.bf16.mxu0 0
    %309 = vmatpush1.bf16.msra.mxu0 0
    %310 = vmatprep.subr.bf16.mxu0 0
    %311 = vmatpush1.bf16.msra.mxu0 0
    %312 = vmatprep.subr.bf16.mxu0 0
    %313 = vmatpush1.bf16.msra.mxu0 0
    %314 = vmatprep.subr.bf16.mxu0 0
    %315 = vmatpush1.bf16.msra.mxu0 0
    %316 = vmatprep.subr.bf16.mxu0 0
    %317 = vmatpush1.bf16.msra.mxu0 0
    %318 = vmatprep.subr.bf16.mxu0 0
    %319 = vmatpush1.bf16.msra.mxu0 0
    %320 = vmatprep.subr.bf16.mxu0 0
    %321 = vmatpush1.bf16.msra.mxu0 0
    %322 = vmatprep.subr.bf16.mxu0 0
    %323 = vmatpush1.bf16.msra.mxu0 0
    %324 = vmatprep.mubr.bf16.mxu0 0
    %325 = vmatmul.mubr.bf16.gmra.mrb[0].mxu0 %v220
    %v326 = vpop.f32.mrb[0].mxu0
    %v327 = vadd.f32 %v242, %v326
    %v328 = vpop.f32.mrb[0].mxu0
    %v329 = vpop.f32.mrb[0].mxu0
    %v330 = vpop.f32.mrb[0].mxu0
    %331 = vdwg.mxu0
    %vm332 = vcmask 64512
    %333 = vst.msk [vmem:[#allocation5] sm:$0xff] %vm332, %v327
    // Predicated region
    $region34: #{tpu_custom_call.1} parent=1 // pred_check
      _
    $region35: #{tpu_custom_call.1} parent=1 // pred_check_branch
      %335 = sbr.rel (0) target = $region37
    $region36: #{tpu_custom_call.1} parent=1 // pred_region
      %s337 = ssub.s32 128, 128
      %338 = vsyncadd [#allocation4], %s337
      %s340 = sshll.u32 [#allocation5], 4
      %s341 = int_to_ptr.vmem [resolvable:$true] %s340
      %343 = dma.vmem_to_hbm [thread:$0]  %s341, 128, %s7, [#allocation4]
    $region37: #{tpu_custom_call.1} parent=1 // pred_fallthru
      _
    // Predicated region
    $region38: #{tpu_custom_call.1} parent=1 // pred_check
      _
    $region39: #{tpu_custom_call.1} parent=1 // pred_check_branch
      %345 = sbr.rel (0) target = $region41
    $region40: #{tpu_custom_call.1} parent=1 // pred_region
      %346 = dma.done [#allocation4], 128
    $region41: #{tpu_custom_call.1} parent=1 // pred_fallthru
      _
    %347 = vsyncpa [#allocation3], 1
    %348 = vsyncpa [#allocation4], 1

</llo_original>
